<compile_context>
chip_gen: v5e
topology: v5e:2x2
jax: 0.10.0
libtpu: 0.0.40
codegen_flags: <defaults>
</compile_context>

<pallas_src>
import functools

import jax
import jax.numpy as jnp
from jax.experimental import pallas as pl
from jax.experimental.pallas import tpu as pltpu


def _round_up(x, m):
    return (x + m - 1) // m * m


def _cdiv(a, b):
    return -(-a // b)


def _choose_tb(batch, tb_min=1024, tb_max=4096):
    """Batch tile: large (amortize ~0.35-0.6us/step grid overhead), multiple of
    128 (lane-dense tiles), and >=2 grid steps once batch > 2*tb_min so the
    'parallel' axis can split across v7x's two TensorCores."""
    if batch <= 2 * tb_min:
        return max(_round_up(batch, 128), 128)          # single grid step
    return min(tb_max, _round_up(_cdiv(batch, 2), 128))  # >= 2 steps


def _policy_kernel(Kp, Hp, A, a_range_ref, x_ref, w_ref, b_ref, o_ref):
    """Fused Policy MLP, transposed layout.

    x_ref:  (Kp, TB)  bf16   packed [s;g]^T, batch on lanes
    w_ref:  (4, Hp, Hp) bf16 W_l^T per layer (layer-4 pre-scaled by 0.005)
    b_ref:  (Hp, 4)   f32    bias column per layer (layer-4 pre-scaled)
    o_ref:  (A, TB)   f32    tanh(.) * a_range, lane-dense stores
    """
    f32 = jnp.float32
    cdt = w_ref.dtype                       # bf16 MXU compute dtype
    a_range = a_range_ref[0]                # SMEM scalar

    x = x_ref[...].astype(cdt)              # (Kp, TB)

    # Layer 1: (Hp, Kp) @ (Kp, TB) — single matmul replaces cat([s, g], dim=1).
    h = jnp.dot(w_ref[0, :, :Kp], x, preferred_element_type=f32) + b_ref[:, 0:1]
    h = jnp.maximum(h, 0.0)

    h = jnp.dot(w_ref[1, :, :], h.astype(cdt),
                preferred_element_type=f32) + b_ref[:, 1:2]
    h = jnp.maximum(h, 0.0)

    h = jnp.dot(w_ref[2, :, :], h.astype(cdt),
                preferred_element_type=f32) + b_ref[:, 2:3]
    h = jnp.maximum(h, 0.0)

    # Layer 4 (0.005 already folded into w/b); keep only the first A rows.
    a = jnp.dot(w_ref[3, :, :], h.astype(cdt),
                preferred_element_type=f32)[:A, :] + b_ref[:A, 3:4]

    o_ref[...] = jnp.tanh(a) * a_range      # f32 epilogue (no bf16 VPU needed)


def init_policy_params(key, state_size, goal_size, hidden_size, action_size):
    """Deterministic init mimicking nn.Linear default U[-1/sqrt(fan_in), +]."""
    input_size = state_size + goal_size
    dims = [(input_size, hidden_size),
            (hidden_size, hidden_size),
            (hidden_size, hidden_size),
            (hidden_size, action_size)]
    params = {}
    for i, (fan_in, fan_out) in enumerate(dims, start=1):
        key, kw, kb = jax.random.split(key, 3)
        bound = 1.0 / jnp.sqrt(jnp.float32(fan_in))
        params[f"w{i}"] = jax.random.uniform(
            kw, (fan_in, fan_out), jnp.float32, -bound, bound)
        params[f"b{i}"] = jax.random.uniform(
            kb, (1, fan_out), jnp.float32, -bound, bound)
    return params


def pack_policy_params(params, state_size, goal_size, hidden_size, action_size,
                       matmul_dtype=jnp.bfloat16):
    """One-time packing: (4, Hp, Hp) bf16 weight slab (W^T per layer, hidden
    padded to a multiple of 128 lanes) + (Hp, 4) f32 bias slab. The 0.005
    pre-tanh scale is folded into layer 4 here (constant fold, not a per-call
    wrapper op). Zero padding provably propagates zeros through every ReLU."""
    H, A = hidden_size, action_size
    Kin = state_size + goal_size
    Hp = max(_round_up(H, 128), 128)
    Kp = _round_up(Kin, 16)                 # bf16 sublane-pack aligned
    assert Kp <= Hp, "state+goal wider than padded hidden is not supported"
    assert A <= Hp

    w = jnp.zeros((4, Hp, Hp), jnp.float32)
    w = w.at[0, :H, :Kin].set(params["w1"].T)
    w = w.at[1, :H, :H].set(params["w2"].T)
    w = w.at[2, :H, :H].set(params["w3"].T)
    w = w.at[3, :A, :H].set(params["w4"].T * 0.005)   # fold pre-tanh scale
    w = w.astype(matmul_dtype)

    b = jnp.zeros((Hp, 4), jnp.float32)
    b = b.at[:H, 0].set(params["b1"].reshape(-1))
    b = b.at[:H, 1].set(params["b2"].reshape(-1))
    b = b.at[:H, 2].set(params["b3"].reshape(-1))
    b = b.at[:A, 3].set(params["b4"].reshape(-1) * 0.005)

    meta = dict(Hp=Hp, Kp=Kp)
    return w, b, meta


def policy_forward(s, g, w_pack, b_pack, a_range, action_size):
    """Run the fused Pallas Policy MLP. s: (B, S), g: (B, G) -> (B, A) f32."""
    batch, S = s.shape
    G = g.shape[1]
    A = action_size
    Hp = w_pack.shape[-1]
    Kp = _round_up(S + G, 16)

    tb = _choose_tb(batch)
    nb = _cdiv(batch, tb)
    b_pad = nb * tb

    # Producer-side packing: one (Kp, B_pad) bf16 slab, features on sublanes,
    # batch on lanes (lane-dense loads, no in-kernel concat, bf16 DMA bytes).
    # TODO(synk): emit this packed layout directly at the data producer so
    # this wrapper pass over s/g disappears entirely.
    x_t = jnp.zeros((Kp, b_pad), jnp.bfloat16)
    x_t = x_t.at[:S, :batch].set(s.T.astype(jnp.bfloat16))
    x_t = x_t.at[S:S + G, :batch].set(g.T.astype(jnp.bfloat16))

    a_range_arr = jnp.asarray(a_range, jnp.float32).reshape(1)

    kernel = functools.partial(_policy_kernel, Kp, Hp, A)

    out_t = pl.pallas_call(
        kernel,
        out_shape=jax.ShapeDtypeStruct((A, b_pad), jnp.float32),
        grid=(nb,),
        in_specs=[
            pl.BlockSpec(memory_space=pltpu.MemorySpace.SMEM),   # a_range scalar
            pl.BlockSpec((Kp, tb), lambda i: (0, i)),            # x^T batch tile
            pl.BlockSpec(w_pack.shape, lambda i: (0, 0, 0)),     # weights (resident)
            pl.BlockSpec(b_pack.shape, lambda i: (0, 0)),        # biases (resident)
        ],
        out_specs=pl.BlockSpec((A, tb), lambda i: (0, i)),       # lane-dense output
        compiler_params=pltpu.CompilerParams(
            dimension_semantics=("parallel",),
            vmem_limit_bytes=48 * 1024 * 1024),
    )(a_range_arr, x_t, w_pack, b_pack)

    # Layout plumbing only: drop batch padding, present (B, A) like the module.
    return out_t[:, :batch].T


def _reference(s, g, params, a_range):
    x = jnp.concatenate([s, g], axis=1)
    h = jnp.maximum(x @ params["w1"] + params["b1"], 0.0)
    h = jnp.maximum(h @ params["w2"] + params["b2"], 0.0)
    h = jnp.maximum(h @ params["w3"] + params["b3"], 0.0)
    return jnp.tanh((h @ params["w4"] + params["b4"]) * 0.005) * a_range


if __name__ == "__main__":
    state_size, goal_size = 4, 2
    hidden_size, action_size = 32, 2
    a_range = 1.0

    key = jax.random.PRNGKey(0)
    key, kp = jax.random.split(key)
    params = init_policy_params(kp, state_size, goal_size, hidden_size, action_size)
    w_pack, b_pack, _ = pack_policy_params(
        params, state_size, goal_size, hidden_size, action_size)

    ok = True
    # Small batch (single padded tile) and a non-divisible batch (padded,
    # multi-step grid) to exercise both grid paths.
    for batch in (8, 2500):
        key, ks, kg = jax.random.split(key, 3)
        s = jax.random.normal(ks, (batch, state_size), jnp.float32)
        g = jax.random.normal(kg, (batch, goal_size), jnp.float32)

        out = policy_forward(s, g, w_pack, b_pack, a_range, action_size)
        jax.block_until_ready(out)

        ref = _reference(s, g, params, a_range)
        assert out.shape == (batch, action_size)
        # bf16 matmul inputs vs f32 reference: relaxed tolerance (outputs are
        # ~1e-2 in magnitude after the *0.005 + tanh epilogue).
        if not jnp.allclose(out, ref, atol=2e-3, rtol=2e-2):
            ok = False
            print(f"mismatch vs reference at batch={batch}")

    if ok:
        print("KERNEL_OK")
</pallas_src>

<mosaic_0001>
module attributes {stable_mosaic.version = 11 : i64} {
  func.func @_policy_kernel(%arg0: i32, %arg1: memref<1xf32, #tpu.memory_space<smem>>, %arg2: memref<16x128xbf16, #tpu.memory_space<vmem>>, %arg3: memref<4x128x128xbf16, #tpu.memory_space<vmem>>, %arg4: memref<128x4xf32, #tpu.memory_space<vmem>>, %arg5: memref<2x128xf32, #tpu.memory_space<vmem>>) attributes {dimension_semantics = [#tpu.dimension_semantics<parallel>], iteration_bounds = array<i64: 1>, scalar_prefetch = 0 : i64, scratch_operands = 0 : i64, tpu.core_type = #tpu.core_type<tc>, window_params = [{transform_indices = @transform_0, window_bounds = array<i64: 1>}, {transform_indices = @transform_1, window_bounds = array<i64: 16, 128>}, {pipeline_mode = #tpu.pipeline_mode<synchronous>, transform_indices = @transform_2, window_bounds = array<i64: 4, 128, 128>}, {pipeline_mode = #tpu.pipeline_mode<synchronous>, transform_indices = @transform_3, window_bounds = array<i64: 128, 4>}, {transform_indices = @transform_4, window_bounds = array<i64: 2, 128>}]} {
    %c0 = arith.constant 0 : index
    %0 = memref.load %arg1[%c0] : memref<1xf32, #tpu.memory_space<smem>>
    %c0_0 = arith.constant 0 : index
    %c0_1 = arith.constant 0 : index
    %1 = vector.load %arg2[%c0_0, %c0_1] : memref<16x128xbf16, #tpu.memory_space<vmem>>, vector<16x128xbf16>
    %c0_2 = arith.constant 0 : index
    %c0_3 = arith.constant 0 : index
    %c0_4 = arith.constant 0 : index
    %2 = vector.load %arg3[%c0_2, %c0_3, %c0_4] : memref<4x128x128xbf16, #tpu.memory_space<vmem>>, vector<1x128x16xbf16>
    %3 = vector.shape_cast %2 : vector<1x128x16xbf16> to vector<128x16xbf16>
    %cst = arith.constant dense<0.000000e+00> : vector<128x128xf32>
    %4 = tpu.matmul %3, %1, %cst {dimension_numbers = #tpu.dot_dimension_numbers<[1], [0], [0], [1], [0, 0, 1, 1], [], []>} : vector<128x16xbf16>, vector<16x128xbf16>, vector<128x128xf32> -> vector<128x128xf32>
    %c0_5 = arith.constant 0 : index
    %c0_6 = arith.constant 0 : index
    %5 = vector.load %arg4[%c0_5, %c0_6] : memref<128x4xf32, #tpu.memory_space<vmem>>, vector<128x1xf32>
    %6 = vector.broadcast %5 : vector<128x1xf32> to vector<128x128xf32>
    %7 = arith.addf %4, %6 : vector<128x128xf32>
    %cst_7 = arith.constant 0.000000e+00 : f32
    %8 = vector.broadcast %cst_7 : f32 to vector<128x128xf32>
    %9 = arith.maximumf %7, %8 : vector<128x128xf32>
    %c1 = arith.constant 1 : index
    %c0_8 = arith.constant 0 : index
    %c0_9 = arith.constant 0 : index
    %10 = vector.load %arg3[%c1, %c0_8, %c0_9] : memref<4x128x128xbf16, #tpu.memory_space<vmem>>, vector<1x128x128xbf16>
    %11 = vector.shape_cast %10 : vector<1x128x128xbf16> to vector<128x128xbf16>
    %12 = arith.truncf %9 : vector<128x128xf32> to vector<128x128xbf16>
    %cst_10 = arith.constant dense<0.000000e+00> : vector<128x128xf32>
    %13 = tpu.matmul %11, %12, %cst_10 {dimension_numbers = #tpu.dot_dimension_numbers<[1], [0], [0], [1], [0, 0, 1, 1], [], []>} : vector<128x128xbf16>, vector<128x128xbf16>, vector<128x128xf32> -> vector<128x128xf32>
    %c0_11 = arith.constant 0 : index
    %c1_12 = arith.constant 1 : index
    %14 = vector.load %arg4[%c0_11, %c1_12] : memref<128x4xf32, #tpu.memory_space<vmem>>, vector<128x1xf32>
    %15 = vector.broadcast %14 : vector<128x1xf32> to vector<128x128xf32>
    %16 = arith.addf %13, %15 : vector<128x128xf32>
    %cst_13 = arith.constant 0.000000e+00 : f32
    %17 = vector.broadcast %cst_13 : f32 to vector<128x128xf32>
    %18 = arith.maximumf %16, %17 : vector<128x128xf32>
    %c2 = arith.constant 2 : index
    %c0_14 = arith.constant 0 : index
    %c0_15 = arith.constant 0 : index
    %19 = vector.load %arg3[%c2, %c0_14, %c0_15] : memref<4x128x128xbf16, #tpu.memory_space<vmem>>, vector<1x128x128xbf16>
    %20 = vector.shape_cast %19 : vector<1x128x128xbf16> to vector<128x128xbf16>
    %21 = arith.truncf %18 : vector<128x128xf32> to vector<128x128xbf16>
    %cst_16 = arith.constant dense<0.000000e+00> : vector<128x128xf32>
    %22 = tpu.matmul %20, %21, %cst_16 {dimension_numbers = #tpu.dot_dimension_numbers<[1], [0], [0], [1], [0, 0, 1, 1], [], []>} : vector<128x128xbf16>, vector<128x128xbf16>, vector<128x128xf32> -> vector<128x128xf32>
    %c0_17 = arith.constant 0 : index
    %c2_18 = arith.constant 2 : index
    %23 = vector.load %arg4[%c0_17, %c2_18] : memref<128x4xf32, #tpu.memory_space<vmem>>, vector<128x1xf32>
    %24 = vector.broadcast %23 : vector<128x1xf32> to vector<128x128xf32>
    %25 = arith.addf %22, %24 : vector<128x128xf32>
    %cst_19 = arith.constant 0.000000e+00 : f32
    %26 = vector.broadcast %cst_19 : f32 to vector<128x128xf32>
    %27 = arith.maximumf %25, %26 : vector<128x128xf32>
    %c3 = arith.constant 3 : index
    %c0_20 = arith.constant 0 : index
    %c0_21 = arith.constant 0 : index
    %28 = vector.load %arg3[%c3, %c0_20, %c0_21] : memref<4x128x128xbf16, #tpu.memory_space<vmem>>, vector<1x128x128xbf16>
    %29 = vector.shape_cast %28 : vector<1x128x128xbf16> to vector<128x128xbf16>
    %30 = arith.truncf %27 : vector<128x128xf32> to vector<128x128xbf16>
    %cst_22 = arith.constant dense<0.000000e+00> : vector<128x128xf32>
    %31 = tpu.matmul %29, %30, %cst_22 {dimension_numbers = #tpu.dot_dimension_numbers<[1], [0], [0], [1], [0, 0, 1, 1], [], []>} : vector<128x128xbf16>, vector<128x128xbf16>, vector<128x128xf32> -> vector<128x128xf32>
    %32 = vector.extract_strided_slice %31 {offsets = [0, 0], sizes = [2, 128], strides = [1, 1]} : vector<128x128xf32> to vector<2x128xf32>
    %c0_23 = arith.constant 0 : index
    %c3_24 = arith.constant 3 : index
    %33 = vector.load %arg4[%c0_23, %c3_24] : memref<128x4xf32, #tpu.memory_space<vmem>>, vector<2x1xf32>
    %34 = vector.broadcast %33 : vector<2x1xf32> to vector<2x128xf32>
    %35 = arith.addf %32, %34 : vector<2x128xf32>
    %36 = math.tanh %35 : vector<2x128xf32>
    %37 = vector.broadcast %0 : f32 to vector<2x128xf32>
    %38 = arith.mulf %36, %37 : vector<2x128xf32>
    %c0_25 = arith.constant 0 : index
    %c0_26 = arith.constant 0 : index
    %39 = vector.load %arg5[%c0_25, %c0_26] : memref<2x128xf32, #tpu.memory_space<vmem>>, vector<2x128xf32>
    tpu.vector_store %arg5[%c0_25, %c0_26], %38 {strides = array<i32>} : memref<2x128xf32, #tpu.memory_space<vmem>>, vector<2x128xf32>,
    return
  }
  func.func @transform_0(%arg0: i32) -> i32 {
    %c0_i32 = arith.constant 0 : i32
    %c0_i32_0 = arith.constant 0 : i32
    return %c0_i32 : i32
  }
  func.func @transform_1(%arg0: i32) -> (i32, i32) {
    %c0_i32 = arith.constant 0 : i32
    %c0_i32_0 = arith.constant 0 : i32
    return %c0_i32, %arg0 : i32, i32
  }
  func.func @transform_2(%arg0: i32) -> (i32, i32, i32) {
    %c0_i32 = arith.constant 0 : i32
    %c0_i32_0 = arith.constant 0 : i32
    %c0_i32_1 = arith.constant 0 : i32
    %c0_i32_2 = arith.constant 0 : i32
    return %c0_i32, %c0_i32_0, %c0_i32_1 : i32, i32, i32
  }
  func.func @transform_3(%arg0: i32) -> (i32, i32) {
    %c0_i32 = arith.constant 0 : i32
    %c0_i32_0 = arith.constant 0 : i32
    %c0_i32_1 = arith.constant 0 : i32
    return %c0_i32, %c0_i32_0 : i32, i32
  }
  func.func @transform_4(%arg0: i32) -> (i32, i32) {
    %c0_i32 = arith.constant 0 : i32
    %c0_i32_0 = arith.constant 0 : i32
    return %c0_i32, %arg0 : i32, i32
  }
}

</mosaic_0001>

<llo_original>
// kernel: tpu_custom_call.1
$region0: #{tpu_custom_call.1}
  #allocation0 [shape = 'u32[]', space=smem, size = 0x4, offset = 0x4, fixed_abs, tag = 'smem constant byte address 0x4 - core index']
  #allocation1 [shape = 'u32[72,128]{1,0:T(1,128)}', space=vmem, size = 0x9000, scoped, tag = 'internal scratch']
  #allocation2 [shape = 'f32[1]{0:T(128)S(6)}', space=smem, size = 0x200, scoped, tag = 'scoped memory for tpu_custom_call.1']
  %s0 = inlined_call_operand.<no memory space> [shape: f32[1], index: 0, kind: input, shape index: {}]
  %s1 = inlined_call_operand.vmem [shape: bf16[16,128], index: 1, kind: input, shape index: {}]
  %s2 = inlined_call_operand.hbm [shape: bf16[4,128,128], index: 2, kind: input, shape index: {}]
  %s3 = inlined_call_operand.vmem [shape: f32[128,4], index: 3, kind: input, shape index: {}]
  %s4 = inlined_call_operand.hbm [shape: f32[2,128], index: 4, kind: output, shape index: {}]
  %s5 = sld [smem:[#allocation0]]
  $region30: #{tpu_custom_call.1} parent=0
    _
  %s7 = ssub.s32 1, %s5
  %s8 = scalar_select 0, %s7, %s5
  %9 = sst [smem:[#allocation2]] %s0
  $region1: #{tpu_custom_call.1} parent=0
    #allocation3 [shape = 'u8[131072]{0}', space=vmem, size = 0x20000, scoped, tag = 'input window, operand 2, single buffered']
    #allocation4 [shape = 's32[1]{0}', space=sflag, size = 0x4, scoped, tag = 'scoped memory for tpu_custom_call.1']
    #allocation5 [shape = 's32[1]{0}', space=sflag, size = 0x4, scoped, tag = 'scoped memory for tpu_custom_call.1']
    #allocation6 [shape = 'u8[1024]{0}', space=vmem, size = 0x400, scoped, tag = 'output window, operand 0, single buffered']
    %10 = vsyncpa [#allocation4], 0
    %11 = vsyncpa [#allocation5], 0
    // Predicated region
    $region2: #{tpu_custom_call.1} parent=1 // pred_check
      _
    $region3: #{tpu_custom_call.1} parent=1 // pred_check_branch
      %13 = sbr.rel (0) target = $region5
    $region4: #{tpu_custom_call.1} parent=1 // pred_region
      _
    $region5: #{tpu_custom_call.1} parent=1 // pred_fallthru
      _
    // Predicated region
    $region6: #{tpu_custom_call.1} parent=1 // pred_check
      _
    $region7: #{tpu_custom_call.1} parent=1 // pred_check_branch
      %15 = sbr.rel (0) target = $region9
    $region8: #{tpu_custom_call.1} parent=1 // pred_region
      _
    $region9: #{tpu_custom_call.1} parent=1 // pred_fallthru
      _
    // Predicated region
    $region10: #{tpu_custom_call.1} parent=1 // pred_check
      _
    $region11: #{tpu_custom_call.1} parent=1 // pred_check_branch
      %17 = sbr.rel (0) target = $region13
    $region12: #{tpu_custom_call.1} parent=1 // pred_region
      %19 = vsyncadd [#allocation4], 0
      %s20 = sshll.u32 %s2, 4
      %s21 = int_to_ptr.hbm [resolvable:$true] %s20
      %s22 = sshll.u32 [#allocation3], 4
      %s23 = int_to_ptr.vmem [resolvable:$true] %s22
      %28 = dma.hbm_to_vmem [thread:$0]  %s21, 4096, %s23, [#allocation4], 64, 64, 4
    $region13: #{tpu_custom_call.1} parent=1 // pred_fallthru
      _
    // Predicated region
    $region14: #{tpu_custom_call.1} parent=1 // pred_check
      _
    $region15: #{tpu_custom_call.1} parent=1 // pred_check_branch
      %30 = sbr.rel (0) target = $region17
    $region16: #{tpu_custom_call.1} parent=1 // pred_region
      _
    $region17: #{tpu_custom_call.1} parent=1 // pred_fallthru
      _
    // Predicated region
    $region18: #{tpu_custom_call.1} parent=1 // pred_check
      _
    $region19: #{tpu_custom_call.1} parent=1 // pred_check_branch
      %32 = sbr.rel (0) target = $region21
    $region20: #{tpu_custom_call.1} parent=1 // pred_region
      %34 = dma.done [#allocation4], 4096
    $region21: #{tpu_custom_call.1} parent=1 // pred_fallthru
      _
    %s36 = sld [smem:[#allocation2]]
    %v37 = vld [vmem:[%s1] sm:$0xf]
    %v38 = vld [vmem:[%s1 + $0x4] sm:$0xf]
    %v39 = vld [vmem:[#allocation3] sm:$0xf]
    %v40 = vld [vmem:[#allocation3 + $0x4] sm:$0xf]
    %v41 = vld [vmem:[#allocation3 + $0x8] sm:$0xf]
    %v42 = vld [vmem:[#allocation3 + $0xc] sm:$0xf]
    %v43 = vld [vmem:[#allocation3 + $0x10] sm:$0xf]
    %v44 = vld [vmem:[#allocation3 + $0x14] sm:$0xf]
    %v45 = vld [vmem:[#allocation3 + $0x18] sm:$0xf]
    %v46 = vld [vmem:[#allocation3 + $0x1c] sm:$0xf]
    %v47 = vld [vmem:[#allocation3 + $0x20] sm:$0xf]
    %v48 = vld [vmem:[#allocation3 + $0x24] sm:$0xf]
    %v49 = vld [vmem:[#allocation3 + $0x28] sm:$0xf]
    %v50 = vld [vmem:[#allocation3 + $0x2c] sm:$0xf]
    %v51 = vld [vmem:[#allocation3 + $0x30] sm:$0xf]
    %v52 = vld [vmem:[#allocation3 + $0x34] sm:$0xf]
    %v53 = vld [vmem:[#allocation3 + $0x38] sm:$0xf]
    %v54 = vld [vmem:[#allocation3 + $0x3c] sm:$0xf]
    %v55 = vld [vmem:[%s3] sm:$0xff]
    %v56 = vld [vmem:[%s3 + $0x8] sm:$0xff]
    %v57 = vld [vmem:[%s3 + $0x10] sm:$0xff]
    %v58 = vld [vmem:[%s3 + $0x18] sm:$0xff]
    %v59 = vld [vmem:[%s3 + $0x20] sm:$0xff]
    %v60 = vld [vmem:[%s3 + $0x28] sm:$0xff]
    %v61 = vld [vmem:[%s3 + $0x30] sm:$0xff]
    %v62 = vld [vmem:[%s3 + $0x38] sm:$0xff]
    %v63 = vld [vmem:[%s3 + $0x40] sm:$0xff]
    %v64 = vld [vmem:[%s3 + $0x48] sm:$0xff]
    %v65 = vld [vmem:[%s3 + $0x50] sm:$0xff]
    %v66 = vld [vmem:[%s3 + $0x58] sm:$0xff]
    %v67 = vld [vmem:[%s3 + $0x60] sm:$0xff]
    %v68 = vld [vmem:[%s3 + $0x68] sm:$0xff]
    %v69 = vld [vmem:[%s3 + $0x70] sm:$0xff]
    %v70 = vld [vmem:[%s3 + $0x78] sm:$0xff]
    %72 = vset.pattern.permute.xlu0 0
    %73 = vperm.xlu0 %72, %v55
    %v74 = vpop.permute.xlu0 %73
    %77 = vset.pattern.permute.xlu0 0
    %78 = vperm.xlu0 %77, %v56
    %v79 = vpop.permute.xlu0 %78
    %82 = vset.pattern.permute.xlu0 0
    %83 = vperm.xlu0 %82, %v57
    %v84 = vpop.permute.xlu0 %83
    %87 = vset.pattern.permute.xlu0 0
    %88 = vperm.xlu0 %87, %v58
    %v89 = vpop.permute.xlu0 %88
    %92 = vset.pattern.permute.xlu0 0
    %93 = vperm.xlu0 %92, %v59
    %v94 = vpop.permute.xlu0 %93
    %97 = vset.pattern.permute.xlu0 0
    %98 = vperm.xlu0 %97, %v60
    %v99 = vpop.permute.xlu0 %98
    %102 = vset.pattern.permute.xlu0 0
    %103 = vperm.xlu0 %102, %v61
    %v104 = vpop.permute.xlu0 %103
    %107 = vset.pattern.permute.xlu0 0
    %108 = vperm.xlu0 %107, %v62
    %v109 = vpop.permute.xlu0 %108
    %112 = vset.pattern.permute.xlu0 0
    %113 = vperm.xlu0 %112, %v63
    %v114 = vpop.permute.xlu0 %113
    %117 = vset.pattern.permute.xlu0 0
    %118 = vperm.xlu0 %117, %v64
    %v119 = vpop.permute.xlu0 %118
    %122 = vset.pattern.permute.xlu0 0
    %123 = vperm.xlu0 %122, %v65
    %v124 = vpop.permute.xlu0 %123
    %127 = vset.pattern.permute.xlu0 0
    %128 = vperm.xlu0 %127, %v66
    %v129 = vpop.permute.xlu0 %128
    %132 = vset.pattern.permute.xlu0 0
    %133 = vperm.xlu0 %132, %v67
    %v134 = vpop.permute.xlu0 %133
    %137 = vset.pattern.permute.xlu0 0
    %138 = vperm.xlu0 %137, %v68
    %v139 = vpop.permute.xlu0 %138
    %142 = vset.pattern.permute.xlu0 0
    %143 = vperm.xlu0 %142, %v69
    %v144 = vpop.permute.xlu0 %143
    %147 = vset.pattern.permute.xlu0 0
    %148 = vperm.xlu0 %147, %v70
    %v149 = vpop.permute.xlu0 %148
    %v167 = vunpack.c.l.b16 %v39
    %v168 = vunpack.c.l.b16 %v40
    %v169 = vunpack.c.l.b16 %v41
    %v170 = vunpack.c.l.b16 %v42
    %v171 = vunpack.c.l.b16 %v43
    %v172 = vunpack.c.l.b16 %v44
    %v173 = vunpack.c.l.b16 %v45
    %v174 = vunpack.c.l.b16 %v46
    %v175 = vunpack.c.l.b16 %v47
    %v176 = vunpack.c.l.b16 %v48
    %v177 = vunpack.c.l.b16 %v49
    %v178 = vunpack.c.l.b16 %v50
    %v179 = vunpack.c.l.b16 %v51
    %v180 = vunpack.c.l.b16 %v52
    %v181 = vunpack.c.l.b16 %v53
    %v182 = vunpack.c.l.b16 %v54
    %v183 = vpack.c.b16 %v168, %v167
    %v184 = vpack.c.b16 %v170, %v169
    %v185 = vpack.c.b16 %v172, %v171
    %v186 = vpack.c.b16 %v174, %v173
    %v187 = vpack.c.b16 %v176, %v175
    %v188 = vpack.c.b16 %v178, %v177
    %v189 = vpack.c.b16 %v180, %v179
    %v190 = vpack.c.b16 %v182, %v181
    %v193 = vunpack.c.l.b16 %v37
    %v194 = vunpack.c.l.b16 %v38
    %v195 = vpack.c.b16 %v194, %v193
    %vm197 = vcmask 130048
    %v199 = vsel %vm197, %v183, 0
    %v202 = vsel %vm197, %v184, 0
    %v205 = vsel %vm197, %v185, 0
    %v208 = vsel %vm197, %v186, 0
    %v211 = vsel %vm197, %v187, 0
    %v214 = vsel %vm197, %v188, 0
    %v217 = vsel %vm197, %v189, 0
    %v220 = vsel %vm197, %v190, 0
    %222 = vmatpush.bf16.msra.mxu0 0
    %223 = vmatpush.bf16.msra.mxu0 0
    %224 = vmatpush.bf16.msra.mxu0 0
    %225 = vmatpush.bf16.msra.mxu0 0
    %226 = vmatpush.bf16.msra.mxu0 0
    %227 = vmatpush.bf16.msra.mxu0 0
    %228 = vmatpush.bf16.msra.mxu0 0
    %229 = vmatpush.bf16.msra.mxu0 %v195
    %230 = vmatmul.bf16.gmra.mxu0 %v199
    %v231 = vpop.f32.mrf.mxu0
    %v232 = vadd.f32 %v74, %v231
    %v233 = vpop.f32.mrf.mxu0
    %v234 = vadd.f32 %v79, %v233
    %235 = vmatmul.bf16.gmra.mxu0 %v202
    %v236 = vpop.f32.mrf.mxu0
    %v237 = vadd.f32 %v84, %v236
    %v238 = vpop.f32.mrf.mxu0
    %v239 = vadd.f32 %v89, %v238
    %240 = vmatmul.bf16.gmra.mxu0 %v205
    %v241 = vpop.f32.mrf.mxu0
    %v242 = vadd.f32 %v94, %v241
    %v243 = vpop.f32.mrf.mxu0
    %v244 = vadd.f32 %v99, %v243
    %245 = vmatmul.bf16.gmra.mxu0 %v208
    %v246 = vpop.f32.mrf.mxu0
    %v247 = vadd.f32 %v104, %v246
    %v248 = vpop.f32.mrf.mxu0
    %v249 = vadd.f32 %v109, %v248
    %250 = vmatmul.bf16.gmra.mxu0 %v211
    %v251 = vpop.f32.mrf.mxu0
    %v252 = vadd.f32 %v114, %v251
    %v253 = vpop.f32.mrf.mxu0
    %v254 = vadd.f32 %v119, %v253
    %255 = vmatmul.bf16.gmra.mxu0 %v214
    %v256 = vpop.f32.mrf.mxu0
    %v257 = vadd.f32 %v124, %v256
    %v258 = vpop.f32.mrf.mxu0
    %v259 = vadd.f32 %v129, %v258
    %260 = vmatmul.bf16.gmra.mxu0 %v217
    %v261 = vpop.f32.mrf.mxu0
    %v262 = vadd.f32 %v134, %v261
    %v263 = vpop.f32.mrf.mxu0
    %v264 = vadd.f32 %v139, %v263
    %265 = vmatmul.bf16.gmra.mxu0 %v220
    %v266 = vpop.f32.mrf.mxu0
    %v267 = vadd.f32 %v144, %v266
    %v268 = vpop.f32.mrf.mxu0
    %v269 = vadd.f32 %v149, %v268
    %270 = vdwg.mxu0
    %v271 = vmax.f32 %v232, 0.0
    %v272 = vmax.f32 %v234, 0.0
    %v273 = vmax.f32 %v237, 0.0
    %v274 = vmax.f32 %v239, 0.0
    %v275 = vmax.f32 %v242, 0.0
    %v276 = vmax.f32 %v244, 0.0
    %v277 = vmax.f32 %v247, 0.0
    %v278 = vmax.f32 %v249, 0.0
    %v279 = vmax.f32 %v252, 0.0
    %v280 = vmax.f32 %v254, 0.0
    %v281 = vmax.f32 %v257, 0.0
    %v282 = vmax.f32 %v259, 0.0
    %v283 = vmax.f32 %v262, 0.0
    %v284 = vmax.f32 %v264, 0.0
    %v285 = vmax.f32 %v267, 0.0
    %v286 = vmax.f32 %v269, 0.0
    %s287 = scalar_lea.vmem [#allocation3], 64
    %v288 = vld [vmem:[%s287] sm:$0xf]
    %v289 = vld [vmem:[%s287 + $0x4] sm:$0xf]
    %v290 = vld [vmem:[%s287 + $0x8] sm:$0xf]
    %v291 = vld [vmem:[%s287 + $0xc] sm:$0xf]
    %v292 = vld [vmem:[%s287 + $0x10] sm:$0xf]
    %v293 = vld [vmem:[%s287 + $0x14] sm:$0xf]
    %v294 = vld [vmem:[%s287 + $0x18] sm:$0xf]
    %v295 = vld [vmem:[%s287 + $0x1c] sm:$0xf]
    %v296 = vld [vmem:[%s287 + $0x20] sm:$0xf]
    %v297 = vld [vmem:[%s287 + $0x24] sm:$0xf]
    %v298 = vld [vmem:[%s287 + $0x28] sm:$0xf]
    %v299 = vld [vmem:[%s287 + $0x2c] sm:$0xf]
    %v300 = vld [vmem:[%s287 + $0x30] sm:$0xf]
    %v301 = vld [vmem:[%s287 + $0x34] sm:$0xf]
    %v302 = vld [vmem:[%s287 + $0x38] sm:$0xf]
    %v303 = vld [vmem:[%s287 + $0x3c] sm:$0xf]
    %v304 = vpack.c.bf16 %v272, %v271
    %v305 = vpack.c.bf16 %v274, %v273
    %v306 = vpack.c.bf16 %v276, %v275
    %v307 = vpack.c.bf16 %v278, %v277
    %v308 = vpack.c.bf16 %v280, %v279
    %v309 = vpack.c.bf16 %v282, %v281
    %v310 = vpack.c.bf16 %v284, %v283
    %v311 = vpack.c.bf16 %v286, %v285
    %312 = vset.pattern.permute.xlu0 1
    %313 = vperm.xlu0 %312, %v55
    %v314 = vpop.permute.xlu0 %313
    %316 = vset.pattern.permute.xlu0 1
    %317 = vperm.xlu0 %316, %v56
    %v318 = vpop.permute.xlu0 %317
    %320 = vset.pattern.permute.xlu0 1
    %321 = vperm.xlu0 %320, %v57
    %v322 = vpop.permute.xlu0 %321
    %324 = vset.pattern.permute.xlu0 1
    %325 = vperm.xlu0 %324, %v58
    %v326 = vpop.permute.xlu0 %325
    %328 = vset.pattern.permute.xlu0 1
    %329 = vperm.xlu0 %328, %v59
    %v330 = vpop.permute.xlu0 %329
    %332 = vset.pattern.permute.xlu0 1
    %333 = vperm.xlu0 %332, %v60
    %v334 = vpop.permute.xlu0 %333
    %336 = vset.pattern.permute.xlu0 1
    %337 = vperm.xlu0 %336, %v61
    %v338 = vpop.permute.xlu0 %337
    %340 = vset.pattern.permute.xlu0 1
    %341 = vperm.xlu0 %340, %v62
    %v342 = vpop.permute.xlu0 %341
    %344 = vset.pattern.permute.xlu0 1
    %345 = vperm.xlu0 %344, %v63
    %v346 = vpop.permute.xlu0 %345
    %348 = vset.pattern.permute.xlu0 1
    %349 = vperm.xlu0 %348, %v64
    %v350 = vpop.permute.xlu0 %349
    %352 = vset.pattern.permute.xlu0 1
    %353 = vperm.xlu0 %352, %v65
    %v354 = vpop.permute.xlu0 %353
    %356 = vset.pattern.permute.xlu0 1
    %357 = vperm.xlu0 %356, %v66
    %v358 = vpop.permute.xlu0 %357
    %360 = vset.pattern.permute.xlu0 1
    %361 = vperm.xlu0 %360, %v67
    %v362 = vpop.permute.xlu0 %361
    %364 = vset.pattern.permute.xlu0 1
    %365 = vperm.xlu0 %364, %v68
    %v366 = vpop.permute.xlu0 %365
    %368 = vset.pattern.permute.xlu0 1
    %369 = vperm.xlu0 %368, %v69
    %v370 = vpop.permute.xlu0 %369
    %372 = vset.pattern.permute.xlu0 1
    %373 = vperm.xlu0 %372, %v70
    %v374 = vpop.permute.xlu0 %373
    %v392 = vunpack.c.l.b16 %v288
    %v393 = vunpack.c.l.b16 %v289
    %v394 = vunpack.c.l.b16 %v290
    %v395 = vunpack.c.l.b16 %v291
    %v396 = vunpack.c.l.b16 %v292
    %v397 = vunpack.c.l.b16 %v293
    %v398 = vunpack.c.l.b16 %v294
    %v399 = vunpack.c.l.b16 %v295
    %v400 = vunpack.c.l.b16 %v296
    %v401 = vunpack.c.l.b16 %v297
    %v402 = vunpack.c.l.b16 %v298
    %v403 = vunpack.c.l.b16 %v299
    %v404 = vunpack.c.l.b16 %v300
    %v405 = vunpack.c.l.b16 %v301
    %v406 = vunpack.c.l.b16 %v302
    %v407 = vunpack.c.l.b16 %v303
    %v408 = vpack.c.b16 %v393, %v392
    %v409 = vpack.c.b16 %v395, %v394
    %v410 = vpack.c.b16 %v397, %v396
    %v411 = vpack.c.b16 %v399, %v398
    %v412 = vpack.c.b16 %v401, %v400
    %v413 = vpack.c.b16 %v403, %v402
    %v414 = vpack.c.b16 %v405, %v404
    %v415 = vpack.c.b16 %v407, %v406
    %424 = vmatpush.bf16.msra.mxu0 %v311
    %425 = vmatpush.bf16.msra.mxu0 %v310
    %426 = vmatpush.bf16.msra.mxu0 %v309
    %427 = vmatpush.bf16.msra.mxu0 %v308
    %428 = vmatpush.bf16.msra.mxu0 %v307
    %429 = vmatpush.bf16.msra.mxu0 %v306
    %430 = vmatpush.bf16.msra.mxu0 %v305
    %431 = vmatpush.bf16.msra.mxu0 %v304
    %432 = vmatmul.bf16.gmra.mxu0 %v408
    %v433 = vpop.f32.mrf.mxu0
    %v434 = vadd.f32 %v314, %v433
    %v435 = vpop.f32.mrf.mxu0
    %v436 = vadd.f32 %v318, %v435
    %437 = vmatmul.bf16.gmra.mxu0 %v409
    %v438 = vpop.f32.mrf.mxu0
    %v439 = vadd.f32 %v322, %v438
    %v440 = vpop.f32.mrf.mxu0
    %v441 = vadd.f32 %v326, %v440
    %442 = vmatmul.bf16.gmra.mxu0 %v410
    %v443 = vpop.f32.mrf.mxu0
    %v444 = vadd.f32 %v330, %v443
    %v445 = vpop.f32.mrf.mxu0
    %v446 = vadd.f32 %v334, %v445
    %447 = vmatmul.bf16.gmra.mxu0 %v411
    %v448 = vpop.f32.mrf.mxu0
    %v449 = vadd.f32 %v338, %v448
    %v450 = vpop.f32.mrf.mxu0
    %v451 = vadd.f32 %v342, %v450
    %452 = vmatmul.bf16.gmra.mxu0 %v412
    %v453 = vpop.f32.mrf.mxu0
    %v454 = vadd.f32 %v346, %v453
    %v455 = vpop.f32.mrf.mxu0
    %v456 = vadd.f32 %v350, %v455
    %457 = vmatmul.bf16.gmra.mxu0 %v413
    %v458 = vpop.f32.mrf.mxu0
    %v459 = vadd.f32 %v354, %v458
    %v460 = vpop.f32.mrf.mxu0
    %v461 = vadd.f32 %v358, %v460
    %462 = vmatmul.bf16.gmra.mxu0 %v414
    %v463 = vpop.f32.mrf.mxu0
    %v464 = vadd.f32 %v362, %v463
    %v465 = vpop.f32.mrf.mxu0
    %v466 = vadd.f32 %v366, %v465
    %467 = vmatmul.bf16.gmra.mxu0 %v415
    %v468 = vpop.f32.mrf.mxu0
    %v469 = vadd.f32 %v370, %v468
    %v470 = vpop.f32.mrf.mxu0
    %v471 = vadd.f32 %v374, %v470
    %472 = vdwg.mxu0
    %v473 = vmax.f32 %v434, 0.0
    %v474 = vmax.f32 %v436, 0.0
    %v475 = vmax.f32 %v439, 0.0
    %v476 = vmax.f32 %v441, 0.0
    %v477 = vmax.f32 %v444, 0.0
    %v478 = vmax.f32 %v446, 0.0
    %v479 = vmax.f32 %v449, 0.0
    %v480 = vmax.f32 %v451, 0.0
    %v481 = vmax.f32 %v454, 0.0
    %v482 = vmax.f32 %v456, 0.0
    %v483 = vmax.f32 %v459, 0.0
    %v484 = vmax.f32 %v461, 0.0
    %v485 = vmax.f32 %v464, 0.0
    %v486 = vmax.f32 %v466, 0.0
    %v487 = vmax.f32 %v469, 0.0
    %v488 = vmax.f32 %v471, 0.0
    %s489 = scalar_lea.vmem [#allocation3], 128
    %v490 = vld [vmem:[%s489] sm:$0xf]
    %v491 = vld [vmem:[%s489 + $0x4] sm:$0xf]
    %v492 = vld [vmem:[%s489 + $0x8] sm:$0xf]
    %v493 = vld [vmem:[%s489 + $0xc] sm:$0xf]
    %v494 = vld [vmem:[%s489 + $0x10] sm:$0xf]
    %v495 = vld [vmem:[%s489 + $0x14] sm:$0xf]
    %v496 = vld [vmem:[%s489 + $0x18] sm:$0xf]
    %v497 = vld [vmem:[%s489 + $0x1c] sm:$0xf]
    %v498 = vld [vmem:[%s489 + $0x20] sm:$0xf]
    %v499 = vld [vmem:[%s489 + $0x24] sm:$0xf]
    %v500 = vld [vmem:[%s489 + $0x28] sm:$0xf]
    %v501 = vld [vmem:[%s489 + $0x2c] sm:$0xf]
    %v502 = vld [vmem:[%s489 + $0x30] sm:$0xf]
    %v503 = vld [vmem:[%s489 + $0x34] sm:$0xf]
    %v504 = vld [vmem:[%s489 + $0x38] sm:$0xf]
    %v505 = vld [vmem:[%s489 + $0x3c] sm:$0xf]
    %v506 = vpack.c.bf16 %v474, %v473
    %v507 = vpack.c.bf16 %v476, %v475
    %v508 = vpack.c.bf16 %v478, %v477
    %v509 = vpack.c.bf16 %v480, %v479
    %v510 = vpack.c.bf16 %v482, %v481
    %v511 = vpack.c.bf16 %v484, %v483
    %v512 = vpack.c.bf16 %v486, %v485
    %v513 = vpack.c.bf16 %v488, %v487
    %514 = vset.pattern.permute.xlu0 2
    %515 = vperm.xlu0 %514, %v55
    %v516 = vpop.permute.xlu0 %515
    %518 = vset.pattern.permute.xlu0 2
    %519 = vperm.xlu0 %518, %v56
    %v520 = vpop.permute.xlu0 %519
    %522 = vset.pattern.permute.xlu0 2
    %523 = vperm.xlu0 %522, %v57
    %v524 = vpop.permute.xlu0 %523
    %526 = vset.pattern.permute.xlu0 2
    %527 = vperm.xlu0 %526, %v58
    %v528 = vpop.permute.xlu0 %527
    %530 = vset.pattern.permute.xlu0 2
    %531 = vperm.xlu0 %530, %v59
    %v532 = vpop.permute.xlu0 %531
    %534 = vset.pattern.permute.xlu0 2
    %535 = vperm.xlu0 %534, %v60
    %v536 = vpop.permute.xlu0 %535
    %538 = vset.pattern.permute.xlu0 2
    %539 = vperm.xlu0 %538, %v61
    %v540 = vpop.permute.xlu0 %539
    %542 = vset.pattern.permute.xlu0 2
    %543 = vperm.xlu0 %542, %v62
    %v544 = vpop.permute.xlu0 %543
    %546 = vset.pattern.permute.xlu0 2
    %547 = vperm.xlu0 %546, %v63
    %v548 = vpop.permute.xlu0 %547
    %550 = vset.pattern.permute.xlu0 2
    %551 = vperm.xlu0 %550, %v64
    %v552 = vpop.permute.xlu0 %551
    %554 = vset.pattern.permute.xlu0 2
    %555 = vperm.xlu0 %554, %v65
    %v556 = vpop.permute.xlu0 %555
    %558 = vset.pattern.permute.xlu0 2
    %559 = vperm.xlu0 %558, %v66
    %v560 = vpop.permute.xlu0 %559
    %562 = vset.pattern.permute.xlu0 2
    %563 = vperm.xlu0 %562, %v67
    %v564 = vpop.permute.xlu0 %563
    %566 = vset.pattern.permute.xlu0 2
    %567 = vperm.xlu0 %566, %v68
    %v568 = vpop.permute.xlu0 %567
    %570 = vset.pattern.permute.xlu0 2
    %571 = vperm.xlu0 %570, %v69
    %v572 = vpop.permute.xlu0 %571
    %574 = vset.pattern.permute.xlu0 2
    %575 = vperm.xlu0 %574, %v70
    %v576 = vpop.permute.xlu0 %575
    %v594 = vunpack.c.l.b16 %v490
    %v595 = vunpack.c.l.b16 %v491
    %v596 = vunpack.c.l.b16 %v492
    %v597 = vunpack.c.l.b16 %v493
    %v598 = vunpack.c.l.b16 %v494
    %v599 = vunpack.c.l.b16 %v495
    %v600 = vunpack.c.l.b16 %v496
    %v601 = vunpack.c.l.b16 %v497
    %v602 = vunpack.c.l.b16 %v498
    %v603 = vunpack.c.l.b16 %v499
    %v604 = vunpack.c.l.b16 %v500
    %v605 = vunpack.c.l.b16 %v501
    %v606 = vunpack.c.l.b16 %v502
    %v607 = vunpack.c.l.b16 %v503
    %v608 = vunpack.c.l.b16 %v504
    %v609 = vunpack.c.l.b16 %v505
    %v610 = vpack.c.b16 %v595, %v594
    %v611 = vpack.c.b16 %v597, %v596
    %v612 = vpack.c.b16 %v599, %v598
    %v613 = vpack.c.b16 %v601, %v600
    %v614 = vpack.c.b16 %v603, %v602
    %v615 = vpack.c.b16 %v605, %v604
    %v616 = vpack.c.b16 %v607, %v606
    %v617 = vpack.c.b16 %v609, %v608
    %626 = vmatpush.bf16.msra.mxu0 %v513
    %627 = vmatpush.bf16.msra.mxu0 %v512
    %628 = vmatpush.bf16.msra.mxu0 %v511
    %629 = vmatpush.bf16.msra.mxu0 %v510
    %630 = vmatpush.bf16.msra.mxu0 %v509
    %631 = vmatpush.bf16.msra.mxu0 %v508
    %632 = vmatpush.bf16.msra.mxu0 %v507
    %633 = vmatpush.bf16.msra.mxu0 %v506
    %634 = vmatmul.bf16.gmra.mxu0 %v610
    %v635 = vpop.f32.mrf.mxu0
    %v636 = vadd.f32 %v516, %v635
    %v637 = vpop.f32.mrf.mxu0
    %v638 = vadd.f32 %v520, %v637
    %639 = vmatmul.bf16.gmra.mxu0 %v611
    %v640 = vpop.f32.mrf.mxu0
    %v641 = vadd.f32 %v524, %v640
    %v642 = vpop.f32.mrf.mxu0
    %v643 = vadd.f32 %v528, %v642
    %644 = vmatmul.bf16.gmra.mxu0 %v612
    %v645 = vpop.f32.mrf.mxu0
    %v646 = vadd.f32 %v532, %v645
    %v647 = vpop.f32.mrf.mxu0
    %v648 = vadd.f32 %v536, %v647
    %649 = vmatmul.bf16.gmra.mxu0 %v613
    %v650 = vpop.f32.mrf.mxu0
    %v651 = vadd.f32 %v540, %v650
    %v652 = vpop.f32.mrf.mxu0
    %v653 = vadd.f32 %v544, %v652
    %654 = vmatmul.bf16.gmra.mxu0 %v614
    %v655 = vpop.f32.mrf.mxu0
    %v656 = vadd.f32 %v548, %v655
    %v657 = vpop.f32.mrf.mxu0
    %v658 = vadd.f32 %v552, %v657
    %659 = vmatmul.bf16.gmra.mxu0 %v615
    %v660 = vpop.f32.mrf.mxu0
    %v661 = vadd.f32 %v556, %v660
    %v662 = vpop.f32.mrf.mxu0
    %v663 = vadd.f32 %v560, %v662
    %664 = vmatmul.bf16.gmra.mxu0 %v616
    %v665 = vpop.f32.mrf.mxu0
    %v666 = vadd.f32 %v564, %v665
    %v667 = vpop.f32.mrf.mxu0
    %v668 = vadd.f32 %v568, %v667
    %669 = vmatmul.bf16.gmra.mxu0 %v617
    %v670 = vpop.f32.mrf.mxu0
    %v671 = vadd.f32 %v572, %v670
    %v672 = vpop.f32.mrf.mxu0
    %v673 = vadd.f32 %v576, %v672
    %674 = vdwg.mxu0
    %v675 = vmax.f32 %v636, 0.0
    %v676 = vmax.f32 %v638, 0.0
    %v677 = vmax.f32 %v641, 0.0
    %v678 = vmax.f32 %v643, 0.0
    %v679 = vmax.f32 %v646, 0.0
    %v680 = vmax.f32 %v648, 0.0
    %v681 = vmax.f32 %v651, 0.0
    %v682 = vmax.f32 %v653, 0.0
    %v683 = vmax.f32 %v656, 0.0
    %v684 = vmax.f32 %v658, 0.0
    %v685 = vmax.f32 %v661, 0.0
    %v686 = vmax.f32 %v663, 0.0
    %v687 = vmax.f32 %v666, 0.0
    %v688 = vmax.f32 %v668, 0.0
    %v689 = vmax.f32 %v671, 0.0
    %v690 = vmax.f32 %v673, 0.0
    %s691 = scalar_lea.vmem [#allocation3], 192
    %v692 = vld [vmem:[%s691] sm:$0xf]
    %v693 = vld [vmem:[%s691 + $0x4] sm:$0xf]
    %v694 = vld [vmem:[%s691 + $0x8] sm:$0xf]
    %v695 = vld [vmem:[%s691 + $0xc] sm:$0xf]
    %v696 = vld [vmem:[%s691 + $0x10] sm:$0xf]
    %v697 = vld [vmem:[%s691 + $0x14] sm:$0xf]
    %v698 = vld [vmem:[%s691 + $0x18] sm:$0xf]
    %v699 = vld [vmem:[%s691 + $0x1c] sm:$0xf]
    %v700 = vld [vmem:[%s691 + $0x20] sm:$0xf]
    %v701 = vld [vmem:[%s691 + $0x24] sm:$0xf]
    %v702 = vld [vmem:[%s691 + $0x28] sm:$0xf]
    %v703 = vld [vmem:[%s691 + $0x2c] sm:$0xf]
    %v704 = vld [vmem:[%s691 + $0x30] sm:$0xf]
    %v705 = vld [vmem:[%s691 + $0x34] sm:$0xf]
    %v706 = vld [vmem:[%s691 + $0x38] sm:$0xf]
    %v707 = vld [vmem:[%s691 + $0x3c] sm:$0xf]
    %v708 = vpack.c.bf16 %v676, %v675
    %v709 = vpack.c.bf16 %v678, %v677
    %v710 = vpack.c.bf16 %v680, %v679
    %v711 = vpack.c.bf16 %v682, %v681
    %v712 = vpack.c.bf16 %v684, %v683
    %v713 = vpack.c.bf16 %v686, %v685
    %v714 = vpack.c.bf16 %v688, %v687
    %v715 = vpack.c.bf16 %v690, %v689
    %v732 = vunpack.c.l.b16 %v692
    %v733 = vunpack.c.l.b16 %v693
    %v734 = vunpack.c.l.b16 %v694
    %v735 = vunpack.c.l.b16 %v695
    %v736 = vunpack.c.l.b16 %v696
    %v737 = vunpack.c.l.b16 %v697
    %v738 = vunpack.c.l.b16 %v698
    %v739 = vunpack.c.l.b16 %v699
    %v740 = vunpack.c.l.b16 %v700
    %v741 = vunpack.c.l.b16 %v701
    %v742 = vunpack.c.l.b16 %v702
    %v743 = vunpack.c.l.b16 %v703
    %v744 = vunpack.c.l.b16 %v704
    %v745 = vunpack.c.l.b16 %v705
    %v746 = vunpack.c.l.b16 %v706
    %v747 = vunpack.c.l.b16 %v707
    %v748 = vpack.c.b16 %v733, %v732
    %v749 = vpack.c.b16 %v735, %v734
    %v750 = vpack.c.b16 %v737, %v736
    %v751 = vpack.c.b16 %v739, %v738
    %v752 = vpack.c.b16 %v741, %v740
    %v753 = vpack.c.b16 %v743, %v742
    %v754 = vpack.c.b16 %v745, %v744
    %v755 = vpack.c.b16 %v747, %v746
    %764 = vmatpush.bf16.msra.mxu0 %v715
    %765 = vmatpush.bf16.msra.mxu0 %v714
    %766 = vmatpush.bf16.msra.mxu0 %v713
    %767 = vmatpush.bf16.msra.mxu0 %v712
    %768 = vmatpush.bf16.msra.mxu0 %v711
    %769 = vmatpush.bf16.msra.mxu0 %v710
    %770 = vmatpush.bf16.msra.mxu0 %v709
    %771 = vmatpush.bf16.msra.mxu0 %v708
    %772 = vmatmul.bf16.gmra.mxu0 %v748
    %v773 = vpop.f32.mrf.mxu0
    %v774 = vadd.f32 0.0, %v773
    %v775 = vpop.f32.mrf.mxu0
    %776 = vmatmul.bf16.gmra.mxu0 %v749
    %v777 = vpop.f32.mrf.mxu0
    %v778 = vpop.f32.mrf.mxu0
    %779 = vmatmul.bf16.gmra.mxu0 %v750
    %v780 = vpop.f32.mrf.mxu0
    %v781 = vpop.f32.mrf.mxu0
    %782 = vmatmul.bf16.gmra.mxu0 %v751
    %v783 = vpop.f32.mrf.mxu0
    %v784 = vpop.f32.mrf.mxu0
    %785 = vmatmul.bf16.gmra.mxu0 %v752
    %v786 = vpop.f32.mrf.mxu0
    %v787 = vpop.f32.mrf.mxu0
    %788 = vmatmul.bf16.gmra.mxu0 %v753
    %v789 = vpop.f32.mrf.mxu0
    %v790 = vpop.f32.mrf.mxu0
    %791 = vmatmul.bf16.gmra.mxu0 %v754
    %v792 = vpop.f32.mrf.mxu0
    %v793 = vpop.f32.mrf.mxu0
    %794 = vmatmul.bf16.gmra.mxu0 %v755
    %v795 = vpop.f32.mrf.mxu0
    %v796 = vpop.f32.mrf.mxu0
    %797 = vdwg.mxu0
    %v798 = vld [vmem:[%s3] sm:$0x3]
    %800 = vset.pattern.permute.xlu0 3
    %801 = vperm.xlu0 %800, %v798
    %v802 = vpop.permute.xlu0 %801
    %v804 = vadd.f32 %v774, %v802
    %v805 = vtanh.pop %v804
    %v806 = vstv %s36
    %v807 = vmul.f32 %v805, %v806
    %808 = vst [vmem:[#allocation6] sm:$0x3] %v807
    // Predicated region
    $region22: #{tpu_custom_call.1} parent=1 // pred_check
      _
    $region23: #{tpu_custom_call.1} parent=1 // pred_check_branch
      %810 = sbr.rel (0) target = $region25
    $region24: #{tpu_custom_call.1} parent=1 // pred_region
      %812 = vsyncadd [#allocation5], 0
      %s814 = sshll.u32 [#allocation6], 4
      %s815 = int_to_ptr.vmem [resolvable:$true] %s814
      %s816 = sshll.u32 %s4, 4
      %s817 = int_to_ptr.hbm [resolvable:$true] %s816
      %819 = dma.vmem_to_hbm [thread:$0]  %s815, 32, %s817, [#allocation5]
    $region25: #{tpu_custom_call.1} parent=1 // pred_fallthru
      _
    // Predicated region
    $region26: #{tpu_custom_call.1} parent=1 // pred_check
      _
    $region27: #{tpu_custom_call.1} parent=1 // pred_check_branch
      %821 = sbr.rel (0) target = $region29
    $region28: #{tpu_custom_call.1} parent=1 // pred_region
      %823 = dma.done [#allocation5], 32
    $region29: #{tpu_custom_call.1} parent=1 // pred_fallthru
      _
    %824 = vsyncpa [#allocation4], 1
    %825 = vsyncpa [#allocation5], 1

</llo_original>
